<compile_context>
chip_gen: v7x
topology: tpu7x:2x2x1
jax: 0.10.0
libtpu: 0.0.40
codegen_flags: <defaults>
</compile_context>

<pallas_src>
import jax
import jax.numpy as jnp
from jax.experimental import pallas as pl
from jax.experimental.pallas import tpu as pltpu


_GELU_C1 = 0.7978845608028654            # sqrt(2 / pi)
_GELU_C2 = 0.7978845608028654 * 0.044715  # sqrt(2 / pi) * 0.044715


def _intermediate_kernel(x_ref, w_ref, b_ref, o_ref):
    # x_ref: [TM, H], w_ref: [H, TN], b_ref: [1, TN], o_ref: [TM, TN]
    x = x_ref[...]
    w = w_ref[...]
    # MXU matmul with f32 accumulation; weight is already [in, out] -> no w.T.
    y = jnp.dot(x, w, preferred_element_type=jnp.float32) + b_ref[...]
    # tanh-approximation GELU; inner polynomial refactored to drop one multiply
    # (no f32 FMA on v6e).  tanh runs on the EUP (separate bundle slot).
    u = y * (_GELU_C1 + _GELU_C2 * (y * y))
    g = 0.5 * y * (1.0 + jnp.tanh(u))
    o_ref[...] = g.astype(o_ref.dtype)


def prepare_linear_params(weight: jax.Array, bias: jax.Array, compute_dtype=None):
    """One-time parameter prep (do this at model init / weight load, NOT per call).

    weight: [N, H]  (nn.Linear layout: [out_features, in_features])
    bias:   [N]
    returns (w_t: [H, N] in compute_dtype, bias2d: [1, N] f32)
    """
    w_t = weight.T
    if compute_dtype is not None:
        w_t = w_t.astype(compute_dtype)
    b2 = bias.astype(jnp.float32).reshape(1, -1)
    return w_t, b2


def bert_intermediate(hidden_states: jax.Array,
                      weight_t: jax.Array,
                      bias2d: jax.Array,
                      *,
                      tile_m: int = 512,
                      tile_n: int = 1024,
                      compute_dtype=None,
                      out_dtype=None) -> jax.Array:
    """BERTIntermediate forward.

    hidden_states: [B, S, H]
    weight_t:      [H, N]   (pre-transposed once via prepare_linear_params)
    bias2d:        [1, N]   float32
    compute_dtype: e.g. jnp.bfloat16 for production (f32 accumulation kept)
    returns:       [B, S, N] in out_dtype (defaults to hidden_states.dtype)
    """
    B, S, H = hidden_states.shape
    Hw, N = weight_t.shape
    assert Hw == H and bias2d.shape == (1, N)
    M = B * S
    if out_dtype is None:
        out_dtype = hidden_states.dtype

    x = hidden_states.reshape(M, H)                 # free reshape (contiguous)
    w = weight_t
    if compute_dtype is not None:                   # casts are no-ops if already prepared
        x = x.astype(compute_dtype)
        if w.dtype != compute_dtype:
            w = w.astype(compute_dtype)

    # Tile sizes: lane-dense multiples of 128 on N, 8-aligned on M; fall back
    # to the full dim when it is smaller than the target tile.
    tm = M if M <= tile_m else tile_m
    tn = N if N <= tile_n else tile_n

    # Grid: N tiles leading (slow), M tiles innermost (fast).  The weight
    # panel's block index (0, j) is constant across the inner M sweep, so its
    # DMA is elided by the pipeliner -> weight fetched only N/tn times.
    grid = (pl.cdiv(N, tn), pl.cdiv(M, tm))

    # VMEM budget: double-buffered footprint of the three streamed blocks,
    # clamped to [32 MiB, 48 MiB] so it is safe on v7x's 64 MiB VMEM too.
    vmem_needed = 2 * (tm * H * x.dtype.itemsize
                       + H * tn * w.dtype.itemsize
                       + tn * 4
                       + tm * tn * jnp.dtype(out_dtype).itemsize)
    vmem_limit = int(min(max(int(vmem_needed * 1.25) + (4 << 20), 32 << 20), 48 << 20))

    cost = pl.CostEstimate(
        flops=2 * M * N * H,
        transcendentals=M * N,
        bytes_accessed=(M * H * x.dtype.itemsize                 # x once per N-panel sweep
                        + H * N * w.dtype.itemsize               # weight: compulsory only
                        + N * 4
                        + M * N * jnp.dtype(out_dtype).itemsize),
    )

    out = pl.pallas_call(
        _intermediate_kernel,
        out_shape=jax.ShapeDtypeStruct((M, N), out_dtype),
        grid=grid,
        in_specs=[
            pl.BlockSpec((tm, H), lambda j, i: (i, 0)),   # x rows, K un-tiled
            pl.BlockSpec((H, tn), lambda j, i: (0, j)),   # weight panel, VMEM-resident over i
            pl.BlockSpec((1, tn), lambda j, i: (0, j)),   # bias slice
        ],
        out_specs=pl.BlockSpec((tm, tn), lambda j, i: (i, j)),
        compiler_params=pltpu.CompilerParams(
            dimension_semantics=("parallel", "parallel"),
            vmem_limit_bytes=vmem_limit,
        ),
        cost_estimate=cost,
    )(x, w, bias2d)

    return out.reshape(B, S, N)


if __name__ == "__main__":
    # Small shapes consistent with the module: hidden=32, intermediate=4*32.
    B, S, H = 2, 8, 32
    N = 4 * H

    key = jax.random.PRNGKey(0)
    k_x, k_w, k_b = jax.random.split(key, 3)

    hidden_states = jax.random.normal(k_x, (B, S, H), dtype=jnp.float32)
    # nn.Linear(hidden_size, intermediate_size): weight [N, H], bias [N]
    bound = 1.0 / (H ** 0.5)
    weight = jax.random.uniform(k_w, (N, H), jnp.float32, -bound, bound)
    bias = jax.random.uniform(k_b, (N,), jnp.float32, -bound, bound)

    # Reference in plain JAX (same tanh-approx GELU as the kernel).
    ref = jax.nn.gelu(hidden_states @ weight.T + bias, approximate=True)

    # f32 path (module-parity check, tight tolerance).
    w_t, b2 = prepare_linear_params(weight, bias)
    out = bert_intermediate(hidden_states, w_t, b2)
    out = jax.block_until_ready(out)
    assert out.shape == (B, S, N)
    assert jnp.allclose(out, ref, atol=1e-5, rtol=1e-5)

    # bf16-operand production path (f32 accumulation), relaxed tolerance.
    w_bf, b2_bf = prepare_linear_params(weight, bias, compute_dtype=jnp.bfloat16)
    out_bf = bert_intermediate(hidden_states, w_bf, b2_bf,
                               compute_dtype=jnp.bfloat16)
    out_bf = jax.block_until_ready(out_bf)
    assert out_bf.shape == (B, S, N)
    assert jnp.allclose(out_bf, ref, atol=2e-2, rtol=2e-2)

    print("KERNEL_OK")
</pallas_src>

<mosaic_0001>
module attributes {stable_mosaic.version = 11 : i64} {
  func.func @_intermediate_kernel(%arg0: i32, %arg1: i32, %arg2: memref<16x32xf32, #tpu.memory_space<vmem>>, %arg3: memref<32x128xf32, #tpu.memory_space<vmem>>, %arg4: memref<1x128xf32, #tpu.memory_space<vmem>>, %arg5: memref<16x128xf32, #tpu.memory_space<vmem>>) attributes {dimension_semantics = [#tpu.dimension_semantics<parallel>, #tpu.dimension_semantics<parallel>], iteration_bounds = array<i64: 1, 1>, scalar_prefetch = 0 : i64, scratch_operands = 0 : i64, tpu.core_type = #tpu.core_type<tc>, window_params = [{transform_indices = @transform_0, window_bounds = array<i64: 16, 32>}, {transform_indices = @transform_1, window_bounds = array<i64: 32, 128>}, {transform_indices = @transform_2, window_bounds = array<i64: 1, 128>}, {transform_indices = @transform_3, window_bounds = array<i64: 16, 128>}]} {
    %c0 = arith.constant 0 : index
    %c0_0 = arith.constant 0 : index
    %0 = vector.load %arg2[%c0, %c0_0] : memref<16x32xf32, #tpu.memory_space<vmem>>, vector<16x32xf32>
    %c0_1 = arith.constant 0 : index
    %c0_2 = arith.constant 0 : index
    %1 = vector.load %arg3[%c0_1, %c0_2] : memref<32x128xf32, #tpu.memory_space<vmem>>, vector<32x128xf32>
    %cst = arith.constant dense<0.000000e+00> : vector<16x128xf32>
    %2 = tpu.matmul %0, %1, %cst {dimension_numbers = #tpu.dot_dimension_numbers<[1], [0], [0], [1], [0, 0, 1, 1], [], []>} : vector<16x32xf32>, vector<32x128xf32>, vector<16x128xf32> -> vector<16x128xf32>
    %c0_3 = arith.constant 0 : index
    %c0_4 = arith.constant 0 : index
    %3 = vector.load %arg4[%c0_3, %c0_4] : memref<1x128xf32, #tpu.memory_space<vmem>>, vector<1x128xf32>
    %4 = vector.broadcast %3 : vector<1x128xf32> to vector<16x128xf32>
    %5 = arith.addf %2, %4 : vector<16x128xf32>
    %6 = arith.mulf %5, %5 : vector<16x128xf32>
    %cst_5 = arith.constant 0.0356774069 : f32
    %7 = vector.broadcast %cst_5 : f32 to vector<16x128xf32>
    %8 = arith.mulf %7, %6 : vector<16x128xf32>
    %cst_6 = arith.constant 0.797884583 : f32
    %9 = vector.broadcast %cst_6 : f32 to vector<16x128xf32>
    %10 = arith.addf %9, %8 : vector<16x128xf32>
    %11 = arith.mulf %5, %10 : vector<16x128xf32>
    %cst_7 = arith.constant 5.000000e-01 : f32
    %12 = vector.broadcast %cst_7 : f32 to vector<16x128xf32>
    %13 = arith.mulf %12, %5 : vector<16x128xf32>
    %14 = math.tanh %11 : vector<16x128xf32>
    %cst_8 = arith.constant 1.000000e+00 : f32
    %15 = vector.broadcast %cst_8 : f32 to vector<16x128xf32>
    %16 = arith.addf %15, %14 : vector<16x128xf32>
    %17 = arith.mulf %13, %16 : vector<16x128xf32>
    %c0_9 = arith.constant 0 : index
    %c0_10 = arith.constant 0 : index
    %18 = vector.load %arg5[%c0_9, %c0_10] : memref<16x128xf32, #tpu.memory_space<vmem>>, vector<16x128xf32>
    tpu.vector_store %arg5[%c0_9, %c0_10], %17 {strides = array<i32>} : memref<16x128xf32, #tpu.memory_space<vmem>>, vector<16x128xf32>,
    return
  }
  func.func @transform_0(%arg0: i32, %arg1: i32) -> (i32, i32) {
    %c0_i32 = arith.constant 0 : i32
    %c0_i32_0 = arith.constant 0 : i32
    return %arg1, %c0_i32 : i32, i32
  }
  func.func @transform_1(%arg0: i32, %arg1: i32) -> (i32, i32) {
    %c0_i32 = arith.constant 0 : i32
    %c0_i32_0 = arith.constant 0 : i32
    return %c0_i32, %arg0 : i32, i32
  }
  func.func @transform_2(%arg0: i32, %arg1: i32) -> (i32, i32) {
    %c0_i32 = arith.constant 0 : i32
    %c0_i32_0 = arith.constant 0 : i32
    return %c0_i32, %arg0 : i32, i32
  }
  func.func @transform_3(%arg0: i32, %arg1: i32) -> (i32, i32) {
    %c0_i32 = arith.constant 0 : i32
    return %arg1, %arg0 : i32, i32
  }
}

</mosaic_0001>

<llo_original>
// kernel: tpu_custom_call.1
$region0: #{tpu_custom_call.1}
  #allocation0 [shape = 'u32[]', space=smem, size = 0x4, offset = 0x4, fixed_abs, tag = 'smem constant byte address 0x4 - core index']
  #allocation1 [shape = 'u32[144,128]{1,0:T(1,128)}', space=vmem, size = 0x12000, scoped, tag = 'internal scratch']
  %s0 = inlined_call_operand.hbm [shape: f32[16,32], index: 0, kind: input, shape index: {}]
  %s1 = inlined_call_operand.hbm [shape: f32[32,128], index: 1, kind: input, shape index: {}]
  %s2 = inlined_call_operand.vmem [shape: f32[1,128], index: 2, kind: input, shape index: {}]
  %s3 = inlined_call_operand.hbm [shape: f32[16,128], index: 3, kind: output, shape index: {}]
  %s4 = sld [smem:[#allocation0]]
  $region30: #{tpu_custom_call.1} parent=0
    _
  %s6 = ssub.s32 1, %s4
  %s7 = scalar_select 0, %s6, %s4
  $region1: #{tpu_custom_call.1} parent=0
    #allocation2 [shape = 'u8[8192]{0}', space=vmem, size = 0x2000, scoped, tag = 'input window, operand 0, single buffered']
    #allocation3 [shape = 's32[1]{0}', space=sflag, size = 0x4, scoped, tag = 'scoped memory for tpu_custom_call.1']
    #allocation4 [shape = 's32[1]{0}', space=sflag, size = 0x4, scoped, tag = 'scoped memory for tpu_custom_call.1']
    #allocation5 [shape = 'u8[16384]{0}', space=vmem, size = 0x4000, scoped, tag = 'input window, operand 1, single buffered']
    #allocation6 [shape = 's32[1]{0}', space=sflag, size = 0x4, scoped, tag = 'scoped memory for tpu_custom_call.1']
    #allocation7 [shape = 'u8[8192]{0}', space=vmem, size = 0x2000, scoped, tag = 'output window, operand 0, single buffered']
    %8 = vsyncpa [#allocation3], 0
    %9 = vsyncpa [#allocation6], 0
    %10 = vsyncpa [#allocation4], 0
    // Predicated region
    $region2: #{tpu_custom_call.1} parent=1 // pred_check
      _
    $region3: #{tpu_custom_call.1} parent=1 // pred_check_branch
      %12 = sbr.rel (0) target = $region5
    $region4: #{tpu_custom_call.1} parent=1 // pred_region
      %s14 = ssub.s32 256, 256
      %15 = vsyncadd [#allocation3], %s14
      %s16 = sshll.u32 [#allocation2], 4
      %s17 = int_to_ptr.vmem [resolvable:$true] %s16
      %22 = dma.hbm_to_vmem [thread:$0]  %s0, 256, %s17, [#allocation3], 128, 128, 8
    $region5: #{tpu_custom_call.1} parent=1 // pred_fallthru
      _
    // Predicated region
    $region6: #{tpu_custom_call.1} parent=1 // pred_check
      _
    $region7: #{tpu_custom_call.1} parent=1 // pred_check_branch
      %24 = sbr.rel (0) target = $region9
    $region8: #{tpu_custom_call.1} parent=1 // pred_region
      %s26 = ssub.s32 512, 512
      %27 = vsyncadd [#allocation6], %s26
      %s28 = sshll.u32 [#allocation5], 4
      %s29 = int_to_ptr.vmem [resolvable:$true] %s28
      %34 = dma.hbm_to_vmem [thread:$0]  %s1, 512, %s29, [#allocation6], 128, 128, 8
    $region9: #{tpu_custom_call.1} parent=1 // pred_fallthru
      _
    // Predicated region
    $region10: #{tpu_custom_call.1} parent=1 // pred_check
      _
    $region11: #{tpu_custom_call.1} parent=1 // pred_check_branch
      %36 = sbr.rel (0) target = $region13
    $region12: #{tpu_custom_call.1} parent=1 // pred_region
      _
    $region13: #{tpu_custom_call.1} parent=1 // pred_fallthru
      _
    // Predicated region
    $region14: #{tpu_custom_call.1} parent=1 // pred_check
      _
    $region15: #{tpu_custom_call.1} parent=1 // pred_check_branch
      %38 = sbr.rel (0) target = $region17
    $region16: #{tpu_custom_call.1} parent=1 // pred_region
      %39 = dma.done [#allocation3], 256
    $region17: #{tpu_custom_call.1} parent=1 // pred_fallthru
      _
    // Predicated region
    $region18: #{tpu_custom_call.1} parent=1 // pred_check
      _
    $region19: #{tpu_custom_call.1} parent=1 // pred_check_branch
      %41 = sbr.rel (0) target = $region21
    $region20: #{tpu_custom_call.1} parent=1 // pred_region
      %42 = dma.done [#allocation6], 512
    $region21: #{tpu_custom_call.1} parent=1 // pred_fallthru
      _
    %v43 = vld [vmem:[#allocation2] sm:$0xff]
    %v44 = vld [vmem:[#allocation2 + $0x8] sm:$0xff]
    %v45 = vld [vmem:[#allocation5] sm:$0xff]
    %v46 = vld [vmem:[#allocation5 + $0x8] sm:$0xff]
    %v47 = vld [vmem:[#allocation5 + $0x10] sm:$0xff]
    %v48 = vld [vmem:[#allocation5 + $0x18] sm:$0xff]
    %v49 = vld [vmem:[%s2] sm:$0x1]
    %v51 = vlaneseq
    %v52 = vshrl.u32 %v51, 7
    %v53 = vsub.s32 0, %v52
    %v54 = vrot.slane %v49, %v53
    %vm56 = vcmask 261120
    %v58 = vsel %vm56, %v43, 0
    %v61 = vsel %vm56, %v44, 0
    %63 = vmatprep.subr.mxu0 0.0
    %64 = vmatpush1.msra.mxu0 %v45
    %65 = vmatprep.subr.mxu0 0.0
    %66 = vmatpush1.msra.mxu0 %v46
    %67 = vmatprep.subr.mxu0 0.0
    %68 = vmatpush1.msra.mxu0 %v47
    %69 = vmatprep.subr.mxu0 0.0
    %70 = vmatpush1.msra.mxu0 %v48
    %71 = vmatprep.subr.mxu0 0.0
    %72 = vmatpush1.msra.mxu0 0.0
    %73 = vmatprep.subr.mxu0 0.0
    %74 = vmatpush1.msra.mxu0 0.0
    %75 = vmatprep.subr.mxu0 0.0
    %76 = vmatpush1.msra.mxu0 0.0
    %77 = vmatprep.subr.mxu0 0.0
    %78 = vmatpush1.msra.mxu0 0.0
    %79 = vmatprep.subr.mxu0 0.0
    %80 = vmatpush1.msra.mxu0 0.0
    %81 = vmatprep.subr.mxu0 0.0
    %82 = vmatpush1.msra.mxu0 0.0
    %83 = vmatprep.subr.mxu0 0.0
    %84 = vmatpush1.msra.mxu0 0.0
    %85 = vmatprep.subr.mxu0 0.0
    %86 = vmatpush1.msra.mxu0 0.0
    %87 = vmatprep.subr.mxu0 0.0
    %88 = vmatpush1.msra.mxu0 0.0
    %89 = vmatprep.subr.mxu0 0.0
    %90 = vmatpush1.msra.mxu0 0.0
    %91 = vmatprep.subr.mxu0 0.0
    %92 = vmatpush1.msra.mxu0 0.0
    %93 = vmatprep.subr.mxu0 0.0
    %94 = vmatpush1.msra.mxu0 0.0
    %95 = vmatprep.subr.mxu0 0.0
    %96 = vmatpush1.msra.mxu0 0.0
    %97 = vmatprep.subr.mxu0 0.0
    %98 = vmatpush1.msra.mxu0 0.0
    %99 = vmatprep.subr.mxu0 0.0
    %100 = vmatpush1.msra.mxu0 0.0
    %101 = vmatprep.subr.mxu0 0.0
    %102 = vmatpush1.msra.mxu0 0.0
    %103 = vmatprep.subr.mxu0 0.0
    %104 = vmatpush1.msra.mxu0 0.0
    %105 = vmatprep.subr.mxu0 0.0
    %106 = vmatpush1.msra.mxu0 0.0
    %107 = vmatprep.subr.mxu0 0.0
    %108 = vmatpush1.msra.mxu0 0.0
    %109 = vmatprep.subr.mxu0 0.0
    %110 = vmatpush1.msra.mxu0 0.0
    %111 = vmatprep.subr.mxu0 0.0
    %112 = vmatpush1.msra.mxu0 0.0
    %113 = vmatprep.subr.mxu0 0.0
    %114 = vmatpush1.msra.mxu0 0.0
    %115 = vmatprep.subr.mxu0 0.0
    %116 = vmatpush1.msra.mxu0 0.0
    %117 = vmatprep.subr.mxu0 0.0
    %118 = vmatpush1.msra.mxu0 0.0
    %119 = vmatprep.subr.mxu0 0.0
    %120 = vmatpush1.msra.mxu0 0.0
    %121 = vmatprep.subr.mxu0 0.0
    %122 = vmatpush1.msra.mxu0 0.0
    %123 = vmatprep.subr.mxu0 0.0
    %124 = vmatpush1.msra.mxu0 0.0
    %125 = vmatprep.subr.mxu0 0.0
    %126 = vmatpush1.msra.mxu0 0.0
    %127 = vmatprep.mubr.f32.mxu0 0.0
    %128 = vmatmul.mubr.f32.gmra.mrb[0].mxu0 %v58
    %v129 = vpop.f32.mrb[0].mxu0
    %v130 = vadd.f32 %v54, %v129
    %v131 = vpop.f32.mrb[0].mxu0
    %132 = vmatprep.mubr.f32.mxu0 0.0
    %133 = vmatmul.mubr.f32.gmra.mrb[0].mxu0 %v61
    %v134 = vpop.f32.mrb[0].mxu0
    %v135 = vadd.f32 %v54, %v134
    %v136 = vpop.f32.mrb[0].mxu0
    %137 = vdwg.mxu0
    %v138 = vmul.f32 %v130, %v130
    %v139 = vmul.f32 %v135, %v135
    %v140 = vmul.f32 %v138, 0.035677407
    %v141 = vmul.f32 %v139, 0.035677407
    %v142 = vadd.f32 %v140, 0.7978846
    %v143 = vadd.f32 %v141, 0.7978846
    %v144 = vmul.f32 %v130, %v142
    %v145 = vmul.f32 %v135, %v143
    %v146 = vmul.f32 %v130, 0.5
    %v147 = vmul.f32 %v135, 0.5
    %v148 = vtanh.pop %v144
    %v149 = vtanh.pop %v145
    %v150 = vadd.f32 %v148, 1.0
    %v151 = vadd.f32 %v149, 1.0
    %v152 = vmul.f32 %v146, %v150
    %v153 = vmul.f32 %v147, %v151
    %154 = vst [vmem:[#allocation7] sm:$0xff] %v152
    %155 = vst [vmem:[#allocation7 + $0x8] sm:$0xff] %v153
    // Predicated region
    $region22: #{tpu_custom_call.1} parent=1 // pred_check
      _
    $region23: #{tpu_custom_call.1} parent=1 // pred_check_branch
      %157 = sbr.rel (0) target = $region25
    $region24: #{tpu_custom_call.1} parent=1 // pred_region
      %s159 = ssub.s32 256, 256
      %160 = vsyncadd [#allocation4], %s159
      %s161 = sshll.u32 [#allocation7], 4
      %s162 = int_to_ptr.vmem [resolvable:$true] %s161
      %167 = dma.vmem_to_hbm [thread:$0]  %s162, 256, %s3, [#allocation4], 128, 128, 8
    $region25: #{tpu_custom_call.1} parent=1 // pred_fallthru
      _
    // Predicated region
    $region26: #{tpu_custom_call.1} parent=1 // pred_check
      _
    $region27: #{tpu_custom_call.1} parent=1 // pred_check_branch
      %169 = sbr.rel (0) target = $region29
    $region28: #{tpu_custom_call.1} parent=1 // pred_region
      %170 = dma.done [#allocation4], 256
    $region29: #{tpu_custom_call.1} parent=1 // pred_fallthru
      _
    %171 = vsyncpa [#allocation3], 1
    %172 = vsyncpa [#allocation6], 1
    %173 = vsyncpa [#allocation4], 1

</llo_original>
